<compile_context>
chip_gen: v7x
topology: tpu7x:2x2x1
jax: 0.10.0
libtpu: 0.0.40
codegen_flags: <defaults>
</compile_context>

<pallas_src>
import functools

import jax
import jax.numpy as jnp
from jax.experimental import pallas as pl
from jax.experimental.pallas import tpu as pltpu

_LANE = 128                       # TPU lane width (last-dim tiling unit)
_VMEM_LIMIT_BYTES = 48 * 1024 * 1024   # explicit scoped-VMEM limit (< 64 MiB v7x physical)


def _round_up(x, m):
    return ((x + m - 1) // m) * m


def _default_max_vocab_tile():
    """Generation-aware max vocab-tile width (columns)."""
    try:
        kind = jax.devices()[0].device_kind.lower()
    except Exception:  # pragma: no cover - defensive
        kind = ""
    # v5e: smaller scoped VMEM / lower HBM BW -> keep tiles <= 1024 columns.
    return 1024 if "v5" in kind else 2048


def _choose_vocab_tiling(voc, max_tile):
    """Pick (tn, vp): lane-dense vocab tile and padded vocab width minimizing padding."""
    assert max_tile % _LANE == 0 and max_tile > 0, max_tile
    vp_min = _round_up(voc, _LANE)
    if vp_min <= max_tile:
        return vp_min, vp_min
    best_tn, best_vp = None, None
    for tn in range(max_tile, _LANE - 1, -_LANE):
        vp = _round_up(vp_min, tn)
        if best_vp is None or vp < best_vp:
            best_tn, best_vp = tn, vp
        if vp == vp_min:          # zero extra padding with the largest such tn
            break
    return best_tn, best_vp


# ---------------------------------------------------------------------------
# Kernel: one grid step = (head-in-group g, vocab tile j)
# ---------------------------------------------------------------------------
def _group_kernel(x_ref, w1_ref, b1_ref, w2_ref, b2_ref, out_ref, h_ref):
    # x_ref  : (B, H)   per-head input (dx for g=0, rx for g=1) -- resident
    # w1_ref : (H, H)   b1_ref: (1, H)                          -- resident
    # w2_ref : (H, TN)  b2_ref: (1, TN)                         -- streamed per tile
    # out_ref: (B, TN)
    # h_ref  : (B, H)   VMEM scratch caching relu(x @ W1 + b1)
    #
    # NOTE: h_ref carries the hidden activation across a head's vocab tiles.
    # The vocab axis (grid axis 1) MUST stay the innermost, sequentially
    # executed ("arbitrary") axis and must NOT be marked "parallel"; h is
    # refreshed whenever j == 0 (start of each head's vocab sweep).
    @pl.when(pl.program_id(1) == 0)
    def _():
        h = jnp.dot(x_ref[...], w1_ref[...], preferred_element_type=jnp.float32)
        h = jnp.maximum(h + b1_ref[...].astype(jnp.float32), 0.0)
        h_ref[...] = h.astype(h_ref.dtype)

    o = jnp.dot(h_ref[...], w2_ref[...], preferred_element_type=jnp.float32)
    out_ref[...] = (o + b2_ref[...].astype(jnp.float32)).astype(out_ref.dtype)


def _fused_group(xs, w1s, b1s, w2s, b2s, *, tn, out_dtype):
    """xs: [2, B, H]; w1s: [2, H, H]; b1s: [2, 1, H]; w2s: [2, H, Vp];
       b2s: [2, 1, Vp]  ->  logits [2, B, Vp] (head g reads xs[g])."""
    n_heads, H, _ = w1s.shape
    _, B, _ = xs.shape
    Vp = w2s.shape[-1]
    assert Vp % tn == 0 and tn % _LANE == 0, (Vp, tn)

    return pl.pallas_call(
        _group_kernel,
        out_shape=jax.ShapeDtypeStruct((n_heads, B, Vp), out_dtype),
        grid_spec=pltpu.PrefetchScalarGridSpec(
            num_scalar_prefetch=0,
            grid=(n_heads, Vp // tn),
            in_specs=[
                # head g uses xs[g] (0 = dx_inputs, 1 = rx_inputs)
                pl.BlockSpec((None, B, H), lambda g, j: (g, 0, 0)),
                # W1/b1: constant index over the vocab axis -> DMAed once per head.
                # (At very large H they could be single-buffered via
                #  pipeline_mode=pl.Buffered(1) to free VMEM for bigger tn.)
                pl.BlockSpec((None, H, H), lambda g, j: (g, 0, 0)),
                pl.BlockSpec((None, 1, H), lambda g, j: (g, 0, 0)),
                # W2/b2: streamed vocab tiles (lane-dense, unmasked stores).
                pl.BlockSpec((None, H, tn), lambda g, j: (g, 0, j)),
                pl.BlockSpec((None, 1, tn), lambda g, j: (g, 0, j)),
            ],
            out_specs=pl.BlockSpec((None, B, tn), lambda g, j: (g, 0, j)),
            scratch_shapes=[pltpu.VMEM((B, H), w2s.dtype)],
        ),
        compiler_params=pltpu.CompilerParams(
            # Head axis parallel -> megacore sharding on v7x (no-op v5e/v6e);
            # vocab axis MUST remain "arbitrary" (see h_ref note in kernel).
            dimension_semantics=("parallel", "arbitrary"),
            vmem_limit_bytes=_VMEM_LIMIT_BYTES,
        ),
    )(xs, w1s, b1s, w2s, b2s)


# ---------------------------------------------------------------------------
# Parameter init / one-time packing / forward
# ---------------------------------------------------------------------------
def init_cls_head_params(key, hidden, voc, dtype=jnp.float32):
    k1, k2, k3, k4 = jax.random.split(key, 4)
    w1 = jax.random.normal(k1, (hidden, hidden), dtype) * 0.02
    b1 = jax.random.normal(k2, (1, hidden), dtype) * 0.02
    w2 = jax.random.normal(k3, (hidden, voc), dtype) * 0.02
    b2 = jax.random.normal(k4, (1, voc), dtype) * 0.02
    return (w1, b1, w2, b2)


def pack_self_supervised_head(params, *, weight_dtype=jnp.float32,
                              max_vocab_tile=None):
    """Pack the 4 heads' weights ONCE (call at init, not per forward).

    Heads 0,1 share dx_voc and heads 2,3 share rx_voc; each group is padded
    only up to its own lane-dense width (multiple of 128 / its vocab tile)."""
    if max_vocab_tile is None:
        max_vocab_tile = _default_max_vocab_tile()

    groups = []
    for (i0, i1) in ((0, 1), (2, 3)):
        voc = int(params[i0][2].shape[1])
        assert int(params[i1][2].shape[1]) == voc, "heads in a group must share vocab size"
        tn, vp = _choose_vocab_tiling(voc, max_vocab_tile)

        def pad_v(a):
            return jnp.pad(a, ((0, 0), (0, vp - a.shape[1])))

        w1s = jnp.stack([params[i0][0], params[i1][0]]).astype(weight_dtype)
        b1s = jnp.stack([params[i0][1], params[i1][1]]).astype(weight_dtype)
        w2s = jnp.stack([pad_v(params[i0][2]), pad_v(params[i1][2])]).astype(weight_dtype)
        b2s = jnp.stack([pad_v(params[i0][3]), pad_v(params[i1][3])]).astype(weight_dtype)
        groups.append(dict(w1=w1s, b1=b1s, w2=w2s, b2=b2s, voc=voc, tn=tn))
    return tuple(groups)


def self_supervised_head(packed, dx_inputs, rx_inputs):
    """Matches SelfSupervisedHead.forward(dx_inputs, rx_inputs):
       (cls0(dx), cls1(rx), cls2(dx), cls3(rx)); heads 0,1 -> dx_voc, 2,3 -> rx_voc."""
    g_dx, g_rx = packed
    compute_dtype = g_dx["w1"].dtype
    out_dtype = dx_inputs.dtype
    xs = jnp.stack([dx_inputs, rx_inputs]).astype(compute_dtype)   # [2, B, H]

    outs = []
    for g in (g_dx, g_rx):
        o = _fused_group(xs, g["w1"], g["b1"], g["w2"], g["b2"],
                         tn=g["tn"], out_dtype=out_dtype)          # [2, B, Vp]
        # Slice padded, lane-dense logits back to the true vocab size so padded
        # columns never leak into downstream loss/softmax.
        outs.append((o[0, :, :g["voc"]], o[1, :, :g["voc"]]))
    (o0, o1), (o2, o3) = outs
    return (o0, o1, o2, o3)


# ---------------------------------------------------------------------------
# References + test
# ---------------------------------------------------------------------------
def _reference(params, dx_inputs, rx_inputs):
    def head(x, w1, b1, w2, b2):
        h = jnp.maximum(x @ w1 + b1, 0.0)
        return h @ w2 + b2

    p0, p1, p2, p3 = params
    return (head(dx_inputs, *p0), head(rx_inputs, *p1),
            head(dx_inputs, *p2), head(rx_inputs, *p3))


def _reference_bf16(params, dx_inputs, rx_inputs):
    bf = jnp.bfloat16

    def head(x, w1, b1, w2, b2):
        h = jnp.dot(x.astype(bf), w1.astype(bf), preferred_element_type=jnp.float32)
        h = jnp.maximum(h + b1.astype(bf).astype(jnp.float32), 0.0).astype(bf)
        o = jnp.dot(h, w2.astype(bf), preferred_element_type=jnp.float32)
        return o + b2.astype(bf).astype(jnp.float32)

    p0, p1, p2, p3 = params
    return (head(dx_inputs, *p0), head(rx_inputs, *p1),
            head(dx_inputs, *p2), head(rx_inputs, *p3))


if __name__ == "__main__":
    def run_case(B, H, dx_voc, rx_voc, seed, *, weight_dtype=jnp.float32,
                 max_vocab_tile=None, atol=1e-5, rtol=1e-5):
        root = jax.random.PRNGKey(seed)
        k_dx, k_rx, k0, k1, k2, k3 = jax.random.split(root, 6)
        dx_inputs = jax.random.normal(k_dx, (B, H), jnp.float32)
        rx_inputs = jax.random.normal(k_rx, (B, H), jnp.float32)
        params = (
            init_cls_head_params(k0, H, dx_voc),   # multi_cls[0] -> dx_voc
            init_cls_head_params(k1, H, dx_voc),   # multi_cls[1] -> dx_voc
            init_cls_head_params(k2, H, rx_voc),   # multi_cls[2] -> rx_voc
            init_cls_head_params(k3, H, rx_voc),   # multi_cls[3] -> rx_voc
        )
        # Pack ONCE at init; the jitted forward reuses the packed slabs.
        packed = pack_self_supervised_head(
            params, weight_dtype=weight_dtype, max_vocab_tile=max_vocab_tile)
        fwd = jax.jit(functools.partial(self_supervised_head, packed))
        outs = jax.block_until_ready(fwd(dx_inputs, rx_inputs))

        ref_fn = _reference if weight_dtype == jnp.float32 else _reference_bf16
        refs = ref_fn(params, dx_inputs, rx_inputs)
        for o, r in zip(outs, refs):
            assert o.shape == r.shape, (o.shape, r.shape)
            err = float(jnp.abs(o - r).max())
            assert jnp.allclose(o, r, atol=atol, rtol=rtol), err

    # Module-scale shapes (batch=2, hidden=32); one vocab tile per group.
    run_case(B=2, H=32, dx_voc=24, rx_voc=40, seed=0)
    # f32, per-group padding + multi-tile rx group (tn=384 -> 2 tiles).
    run_case(B=4, H=64, dx_voc=130, rx_voc=700, seed=1, max_vocab_tile=512)
    # bf16 weight streaming (halved HBM bytes), multi-tile; relaxed tolerance.
    run_case(B=4, H=128, dx_voc=130, rx_voc=700, seed=2,
             weight_dtype=jnp.bfloat16, max_vocab_tile=256, atol=1e-2, rtol=1e-2)

    print("KERNEL_OK")
</pallas_src>

<mosaic_0001>
module attributes {stable_mosaic.version = 11 : i64} {
  func.func @_group_kernel(%arg0: i32, %arg1: i32, %arg2: memref<1x2x32xf32, #tpu.memory_space<vmem>>, %arg3: memref<1x32x32xf32, #tpu.memory_space<vmem>>, %arg4: memref<1x1x32xf32, #tpu.memory_space<vmem>>, %arg5: memref<1x32x128xf32, #tpu.memory_space<vmem>>, %arg6: memref<1x1x128xf32, #tpu.memory_space<vmem>>, %arg7: memref<1x2x128xf32, #tpu.memory_space<vmem>>, %arg8: memref<2x32xf32, #tpu.memory_space<vmem>>) attributes {dimension_semantics = [#tpu.dimension_semantics<parallel>, #tpu.dimension_semantics<arbitrary>], iteration_bounds = array<i64: 2, 1>, scalar_prefetch = 0 : i64, scratch_operands = 1 : i64, tpu.core_type = #tpu.core_type<tc>, window_params = [{transform_indices = @transform_0, window_bounds = array<i64: 1, 2, 32>}, {transform_indices = @transform_1, window_bounds = array<i64: 1, 32, 32>}, {transform_indices = @transform_2, window_bounds = array<i64: 1, 1, 32>}, {transform_indices = @transform_3, window_bounds = array<i64: 1, 32, 128>}, {transform_indices = @transform_4, window_bounds = array<i64: 1, 1, 128>}, {transform_indices = @transform_5, window_bounds = array<i64: 1, 2, 128>}]} {
    %c0_i32 = arith.constant 0 : i32
    %0 = arith.cmpi eq, %arg1, %c0_i32 : i32
    %1 = arith.extui %0 : i1 to i32
    %c0_i32_0 = arith.constant 0 : i32
    %2 = arith.cmpi ne, %1, %c0_i32_0 : i32
    scf.if %2 {
      %c0_11 = arith.constant 0 : index
      %c0_12 = arith.constant 0 : index
      %c0_13 = arith.constant 0 : index
      %14 = vector.load %arg2[%c0_11, %c0_12, %c0_13] : memref<1x2x32xf32, #tpu.memory_space<vmem>>, vector<1x2x32xf32>
      %15 = vector.shape_cast %14 : vector<1x2x32xf32> to vector<2x32xf32>
      %c0_14 = arith.constant 0 : index
      %c0_15 = arith.constant 0 : index
      %c0_16 = arith.constant 0 : index
      %16 = vector.load %arg3[%c0_14, %c0_15, %c0_16] : memref<1x32x32xf32, #tpu.memory_space<vmem>>, vector<1x32x32xf32>
      %17 = vector.shape_cast %16 : vector<1x32x32xf32> to vector<32x32xf32>
      %cst_17 = arith.constant dense<0.000000e+00> : vector<2x32xf32>
      %18 = tpu.matmul %15, %17, %cst_17 {dimension_numbers = #tpu.dot_dimension_numbers<[1], [0], [0], [1], [0, 0, 1, 1], [], []>} : vector<2x32xf32>, vector<32x32xf32>, vector<2x32xf32> -> vector<2x32xf32>
      %c0_18 = arith.constant 0 : index
      %c0_19 = arith.constant 0 : index
      %c0_20 = arith.constant 0 : index
      %19 = vector.load %arg4[%c0_18, %c0_19, %c0_20] : memref<1x1x32xf32, #tpu.memory_space<vmem>>, vector<1x1x32xf32>
      %20 = vector.shape_cast %19 : vector<1x1x32xf32> to vector<1x32xf32>
      %21 = vector.broadcast %20 : vector<1x32xf32> to vector<2x32xf32>
      %22 = arith.addf %18, %21 : vector<2x32xf32>
      %cst_21 = arith.constant 0.000000e+00 : f32
      %23 = vector.broadcast %cst_21 : f32 to vector<2x32xf32>
      %24 = arith.maximumf %22, %23 : vector<2x32xf32>
      %c0_22 = arith.constant 0 : index
      %c0_23 = arith.constant 0 : index
      %25 = vector.load %arg8[%c0_22, %c0_23] : memref<2x32xf32, #tpu.memory_space<vmem>>, vector<2x32xf32>
      tpu.vector_store %arg8[%c0_22, %c0_23], %24 {strides = array<i32>} : memref<2x32xf32, #tpu.memory_space<vmem>>, vector<2x32xf32>,
    } else {
    }
    %c0 = arith.constant 0 : index
    %c0_1 = arith.constant 0 : index
    %3 = vector.load %arg8[%c0, %c0_1] : memref<2x32xf32, #tpu.memory_space<vmem>>, vector<2x32xf32>
    %c0_2 = arith.constant 0 : index
    %c0_3 = arith.constant 0 : index
    %c0_4 = arith.constant 0 : index
    %4 = vector.load %arg5[%c0_2, %c0_3, %c0_4] : memref<1x32x128xf32, #tpu.memory_space<vmem>>, vector<1x32x128xf32>
    %5 = vector.shape_cast %4 : vector<1x32x128xf32> to vector<32x128xf32>
    %cst = arith.constant dense<0.000000e+00> : vector<2x128xf32>
    %6 = tpu.matmul %3, %5, %cst {dimension_numbers = #tpu.dot_dimension_numbers<[1], [0], [0], [1], [0, 0, 1, 1], [], []>} : vector<2x32xf32>, vector<32x128xf32>, vector<2x128xf32> -> vector<2x128xf32>
    %c0_5 = arith.constant 0 : index
    %c0_6 = arith.constant 0 : index
    %c0_7 = arith.constant 0 : index
    %7 = vector.load %arg6[%c0_5, %c0_6, %c0_7] : memref<1x1x128xf32, #tpu.memory_space<vmem>>, vector<1x1x128xf32>
    %8 = vector.shape_cast %7 : vector<1x1x128xf32> to vector<1x128xf32>
    %9 = vector.broadcast %8 : vector<1x128xf32> to vector<2x128xf32>
    %10 = arith.addf %6, %9 : vector<2x128xf32>
    %c0_8 = arith.constant 0 : index
    %c0_9 = arith.constant 0 : index
    %c0_10 = arith.constant 0 : index
    %11 = vector.load %arg7[%c0_8, %c0_9, %c0_10] : memref<1x2x128xf32, #tpu.memory_space<vmem>>, vector<1x2x128xf32>
    %12 = vector.shape_cast %11 : vector<1x2x128xf32> to vector<2x128xf32>
    %13 = vector.shape_cast %10 : vector<2x128xf32> to vector<1x2x128xf32>
    tpu.vector_store %arg7[%c0_8, %c0_9, %c0_10], %13 {strides = array<i32>} : memref<1x2x128xf32, #tpu.memory_space<vmem>>, vector<1x2x128xf32>,
    return
  }
  func.func @transform_0(%arg0: i32, %arg1: i32) -> (i32, i32, i32) {
    %c0_i32 = arith.constant 0 : i32
    %c0_i32_0 = arith.constant 0 : i32
    %c0_i32_1 = arith.constant 0 : i32
    return %arg0, %c0_i32, %c0_i32_0 : i32, i32, i32
  }
  func.func @transform_1(%arg0: i32, %arg1: i32) -> (i32, i32, i32) {
    %c0_i32 = arith.constant 0 : i32
    %c0_i32_0 = arith.constant 0 : i32
    %c0_i32_1 = arith.constant 0 : i32
    return %arg0, %c0_i32, %c0_i32_0 : i32, i32, i32
  }
  func.func @transform_2(%arg0: i32, %arg1: i32) -> (i32, i32, i32) {
    %c0_i32 = arith.constant 0 : i32
    %c0_i32_0 = arith.constant 0 : i32
    %c0_i32_1 = arith.constant 0 : i32
    return %arg0, %c0_i32, %c0_i32_0 : i32, i32, i32
  }
  func.func @transform_3(%arg0: i32, %arg1: i32) -> (i32, i32, i32) {
    %c0_i32 = arith.constant 0 : i32
    %c0_i32_0 = arith.constant 0 : i32
    return %arg0, %c0_i32, %arg1 : i32, i32, i32
  }
  func.func @transform_4(%arg0: i32, %arg1: i32) -> (i32, i32, i32) {
    %c0_i32 = arith.constant 0 : i32
    %c0_i32_0 = arith.constant 0 : i32
    return %arg0, %c0_i32, %arg1 : i32, i32, i32
  }
  func.func @transform_5(%arg0: i32, %arg1: i32) -> (i32, i32, i32) {
    %c0_i32 = arith.constant 0 : i32
    %c0_i32_0 = arith.constant 0 : i32
    return %arg0, %c0_i32, %arg1 : i32, i32, i32
  }
}

module attributes {stable_mosaic.version = 11 : i64} {
  func.func @_group_kernel(%arg0: i32, %arg1: i32, %arg2: memref<1x2x32xf32, #tpu.memory_space<vmem>>, %arg3: memref<1x32x32xf32, #tpu.memory_space<vmem>>, %arg4: memref<1x1x32xf32, #tpu.memory_space<vmem>>, %arg5: memref<1x32x128xf32, #tpu.memory_space<vmem>>, %arg6: memref<1x1x128xf32, #tpu.memory_space<vmem>>, %arg7: memref<1x2x128xf32, #tpu.memory_space<vmem>>, %arg8: memref<2x32xf32, #tpu.memory_space<vmem>>) attributes {dimension_semantics = [#tpu.dimension_semantics<parallel>, #tpu.dimension_semantics<arbitrary>], iteration_bounds = array<i64: 2, 1>, scalar_prefetch = 0 : i64, scratch_operands = 1 : i64, tpu.core_type = #tpu.core_type<tc>, window_params = [{transform_indices = @transform_0, window_bounds = array<i64: 1, 2, 32>}, {transform_indices = @transform_1, window_bounds = array<i64: 1, 32, 32>}, {transform_indices = @transform_2, window_bounds = array<i64: 1, 1, 32>}, {transform_indices = @transform_3, window_bounds = array<i64: 1, 32, 128>}, {transform_indices = @transform_4, window_bounds = array<i64: 1, 1, 128>}, {transform_indices = @transform_5, window_bounds = array<i64: 1, 2, 128>}]} {
    %c0_i32 = arith.constant 0 : i32
    %0 = arith.cmpi eq, %arg1, %c0_i32 : i32
    %1 = arith.extui %0 : i1 to i32
    %c0_i32_0 = arith.constant 0 : i32
    %2 = arith.cmpi ne, %1, %c0_i32_0 : i32
    scf.if %2 {
      %c0_11 = arith.constant 0 : index
      %c0_12 = arith.constant 0 : index
      %c0_13 = arith.constant 0 : index
      %14 = vector.load %arg2[%c0_11, %c0_12, %c0_13] : memref<1x2x32xf32, #tpu.memory_space<vmem>>, vector<1x2x32xf32>
      %15 = vector.shape_cast %14 : vector<1x2x32xf32> to vector<2x32xf32>
      %c0_14 = arith.constant 0 : index
      %c0_15 = arith.constant 0 : index
      %c0_16 = arith.constant 0 : index
      %16 = vector.load %arg3[%c0_14, %c0_15, %c0_16] : memref<1x32x32xf32, #tpu.memory_space<vmem>>, vector<1x32x32xf32>
      %17 = vector.shape_cast %16 : vector<1x32x32xf32> to vector<32x32xf32>
      %cst_17 = arith.constant dense<0.000000e+00> : vector<2x32xf32>
      %18 = tpu.matmul %15, %17, %cst_17 {dimension_numbers = #tpu.dot_dimension_numbers<[1], [0], [0], [1], [0, 0, 1, 1], [], []>} : vector<2x32xf32>, vector<32x32xf32>, vector<2x32xf32> -> vector<2x32xf32>
      %c0_18 = arith.constant 0 : index
      %c0_19 = arith.constant 0 : index
      %c0_20 = arith.constant 0 : index
      %19 = vector.load %arg4[%c0_18, %c0_19, %c0_20] : memref<1x1x32xf32, #tpu.memory_space<vmem>>, vector<1x1x32xf32>
      %20 = vector.shape_cast %19 : vector<1x1x32xf32> to vector<1x32xf32>
      %21 = vector.broadcast %20 : vector<1x32xf32> to vector<2x32xf32>
      %22 = arith.addf %18, %21 : vector<2x32xf32>
      %cst_21 = arith.constant 0.000000e+00 : f32
      %23 = vector.broadcast %cst_21 : f32 to vector<2x32xf32>
      %24 = arith.maximumf %22, %23 : vector<2x32xf32>
      %c0_22 = arith.constant 0 : index
      %c0_23 = arith.constant 0 : index
      %25 = vector.load %arg8[%c0_22, %c0_23] : memref<2x32xf32, #tpu.memory_space<vmem>>, vector<2x32xf32>
      tpu.vector_store %arg8[%c0_22, %c0_23], %24 {strides = array<i32>} : memref<2x32xf32, #tpu.memory_space<vmem>>, vector<2x32xf32>,
    } else {
    }
    %c0 = arith.constant 0 : index
    %c0_1 = arith.constant 0 : index
    %3 = vector.load %arg8[%c0, %c0_1] : memref<2x32xf32, #tpu.memory_space<vmem>>, vector<2x32xf32>
    %c0_2 = arith.constant 0 : index
    %c0_3 = arith.constant 0 : index
    %c0_4 = arith.constant 0 : index
    %4 = vector.load %arg5[%c0_2, %c0_3, %c0_4] : memref<1x32x128xf32, #tpu.memory_space<vmem>>, vector<1x32x128xf32>
    %5 = vector.shape_cast %4 : vector<1x32x128xf32> to vector<32x128xf32>
    %cst = arith.constant dense<0.000000e+00> : vector<2x128xf32>
    %6 = tpu.matmul %3, %5, %cst {dimension_numbers = #tpu.dot_dimension_numbers<[1], [0], [0], [1], [0, 0, 1, 1], [], []>} : vector<2x32xf32>, vector<32x128xf32>, vector<2x128xf32> -> vector<2x128xf32>
    %c0_5 = arith.constant 0 : index
    %c0_6 = arith.constant 0 : index
    %c0_7 = arith.constant 0 : index
    %7 = vector.load %arg6[%c0_5, %c0_6, %c0_7] : memref<1x1x128xf32, #tpu.memory_space<vmem>>, vector<1x1x128xf32>
    %8 = vector.shape_cast %7 : vector<1x1x128xf32> to vector<1x128xf32>
    %9 = vector.broadcast %8 : vector<1x128xf32> to vector<2x128xf32>
    %10 = arith.addf %6, %9 : vector<2x128xf32>
    %c0_8 = arith.constant 0 : index
    %c0_9 = arith.constant 0 : index
    %c0_10 = arith.constant 0 : index
    %11 = vector.load %arg7[%c0_8, %c0_9, %c0_10] : memref<1x2x128xf32, #tpu.memory_space<vmem>>, vector<1x2x128xf32>
    %12 = vector.shape_cast %11 : vector<1x2x128xf32> to vector<2x128xf32>
    %13 = vector.shape_cast %10 : vector<2x128xf32> to vector<1x2x128xf32>
    tpu.vector_store %arg7[%c0_8, %c0_9, %c0_10], %13 {strides = array<i32>} : memref<1x2x128xf32, #tpu.memory_space<vmem>>, vector<1x2x128xf32>,
    return
  }
  func.func @transform_0(%arg0: i32, %arg1: i32) -> (i32, i32, i32) {
    %c0_i32 = arith.constant 0 : i32
    %c0_i32_0 = arith.constant 0 : i32
    %c0_i32_1 = arith.constant 0 : i32
    return %arg0, %c0_i32, %c0_i32_0 : i32, i32, i32
  }
  func.func @transform_1(%arg0: i32, %arg1: i32) -> (i32, i32, i32) {
    %c0_i32 = arith.constant 0 : i32
    %c0_i32_0 = arith.constant 0 : i32
    %c0_i32_1 = arith.constant 0 : i32
    return %arg0, %c0_i32, %c0_i32_0 : i32, i32, i32
  }
  func.func @transform_2(%arg0: i32, %arg1: i32) -> (i32, i32, i32) {
    %c0_i32 = arith.constant 0 : i32
    %c0_i32_0 = arith.constant 0 : i32
    %c0_i32_1 = arith.constant 0 : i32
    return %arg0, %c0_i32, %c0_i32_0 : i32, i32, i32
  }
  func.func @transform_3(%arg0: i32, %arg1: i32) -> (i32, i32, i32) {
    %c0_i32 = arith.constant 0 : i32
    %c0_i32_0 = arith.constant 0 : i32
    return %arg0, %c0_i32, %arg1 : i32, i32, i32
  }
  func.func @transform_4(%arg0: i32, %arg1: i32) -> (i32, i32, i32) {
    %c0_i32 = arith.constant 0 : i32
    %c0_i32_0 = arith.constant 0 : i32
    return %arg0, %c0_i32, %arg1 : i32, i32, i32
  }
  func.func @transform_5(%arg0: i32, %arg1: i32) -> (i32, i32, i32) {
    %c0_i32 = arith.constant 0 : i32
    %c0_i32_0 = arith.constant 0 : i32
    return %arg0, %c0_i32, %arg1 : i32, i32, i32
  }
}

</mosaic_0001>

<llo_original>
// kernel: self_supervised_head.2
$region0: #{self_supervised_head.2}
  #allocation0 [shape = 'u32[]', space=smem, size = 0x4, offset = 0x4, fixed_abs, tag = 'smem constant byte address 0x4 - core index']
  #allocation1 [shape = 'u32[144,128]{1,0:T(1,128)}', space=vmem, size = 0x12000, scoped, tag = 'internal scratch']
  #allocation2 [shape = 'f32[2,32]{1,0:T(2,128)}', space=vmem, size = 0x400, scoped, tag = 'scratch operand']
  %s0 = inlined_call_operand.vmem [shape: f32[2,2,32], index: 0, kind: input, shape index: {}]
  %s1 = inlined_call_operand.vmem [shape: f32[2,32,32], index: 1, kind: input, shape index: {}]
  %s2 = inlined_call_operand.vmem [shape: f32[2,1,32], index: 2, kind: input, shape index: {}]
  %s3 = inlined_call_operand.vmem [shape: f32[2,32,128], index: 3, kind: input, shape index: {}]
  %s4 = inlined_call_operand.vmem [shape: f32[2,1,128], index: 4, kind: input, shape index: {}]
  %s5 = inlined_call_operand.vmem [shape: f32[2,2,128], index: 5, kind: output, shape index: {}]
  %s6 = sld [smem:[#allocation0]]
  $region57: #{self_supervised_head.2} parent=0
    _
  %s8 = ssub.s32 1, %s6
  %s9 = scalar_select 0, %s8, %s6
  loop: start=0, step=1, limit=4
  $region2: #{self_supervised_head.2} parent=0 // loop_pre_header
    _
  $region3: #{self_supervised_head.2} parent=0 // loop_header
    %s11 = sphi 0, %s15
    %p12 = scmp.ge.s32.totalorder %s11, 4
    %s18 = sphi 0, %s30
    %s19 = sphi 0, %s26
    %s20 = sphi 0, %s18
    %s21 = sphi 0, %s19
    %s22 = sphi 0, %s20
    %s23 = sphi 0, %s21
    %s33 = sphi 0, %s35
    %s36 = sphi 0, %s33
    %s37 = sphi 0, %s36
    %s53 = sphi 0, %s37
    %s59 = sphi 0, %s61
    %s62 = sphi 0, %s59
    %s63 = sphi 0, %s62
    %s79 = sphi 0, %s63
    %s85 = sphi 0, %s87
    %s88 = sphi 0, %s85
    %s89 = sphi 0, %s88
    %s105 = sphi 0, %s89
    %s113 = sphi 0, %s115
    %s116 = sphi 0, %s113
    %s117 = sphi 0, %s116
    %s133 = sphi 0, %s117
    %s141 = sphi 0, %s143
    %s144 = sphi 0, %s141
    %s145 = sphi 0, %s144
    %s161 = sphi 0, %s145
    %s169 = sphi 0, %s171
    %s172 = sphi 0, %s169
    %s173 = sphi 0, %s172
    %s189 = sphi 0, %s173
  $region4: #{self_supervised_head.2} parent=0 // loop_header_branch
    %14 = sbr.rel (%p12) target = $region8
  $region5: #{self_supervised_head.2} parent=0 // loop_body
    %s16 = ssub.s32 %s11, 1
    %s17 = ssub.s32 %s11, 2
    %s24 = sadd.s32 1, %s19
    %p25 = scmp.ge.s32.totalorder %s24, 1
    %s26 = scalar_select %p25, 0, %s24
    %s27 = sadd.s32 1, %s18
    %s28 = scalar_select %p25, %s27, %s18
    %p29 = scmp.ge.s32.totalorder %s28, 2
    %s30 = scalar_select %p29, 0, %s28
    %s31 = ssub.s32 %s18, %s30
    %p32 = scmp.eq.s32.totalorder %s31, 0
    %s34 = sadd.s32 %s33, 1
    %s35 = scalar_select %p32, %s33, %s34
    %p38 = pneg %p32
    %p39 = scmp.eq.s32.totalorder %s11, 1
    %p40 = por %p38, %p39
    %p41 = scmp.ne.s32.totalorder %s33, %s36
    %p42 = scmp.eq.s32.totalorder %s11, 0
    %p43 = por %p41, %p42
    %p44 = scmp.ne.s32.totalorder %s33, %s36
    %p45 = scmp.eq.s32.totalorder %s16, 1
    %p46 = por %p44, %p45
    %p47 = scmp.ne.s32.totalorder %s36, %s37
    %p48 = scmp.eq.s32.totalorder %s16, 0
    %p49 = por %p47, %p48
    %p50 = scmp.ne.s32.totalorder %s36, %s37
    %p51 = scmp.eq.s32.totalorder %s17, 1
    %p52 = por %p50, %p51
    %p54 = scmp.ne.s32.totalorder %s37, %s53
    %p55 = scmp.eq.s32.totalorder %s17, 0
    %p56 = por %p54, %p55
    %s57 = ssub.s32 %s18, %s30
    %p58 = scmp.eq.s32.totalorder %s57, 0
    %s60 = sadd.s32 %s59, 1
    %s61 = scalar_select %p58, %s59, %s60
    %p64 = pneg %p58
    %p65 = scmp.eq.s32.totalorder %s11, 1
    %p66 = por %p64, %p65
    %p67 = scmp.ne.s32.totalorder %s59, %s62
    %p68 = scmp.eq.s32.totalorder %s11, 0
    %p69 = por %p67, %p68
    %p70 = scmp.ne.s32.totalorder %s59, %s62
    %p71 = scmp.eq.s32.totalorder %s16, 1
    %p72 = por %p70, %p71
    %p73 = scmp.ne.s32.totalorder %s62, %s63
    %p74 = scmp.eq.s32.totalorder %s16, 0
    %p75 = por %p73, %p74
    %p76 = scmp.ne.s32.totalorder %s62, %s63
    %p77 = scmp.eq.s32.totalorder %s17, 1
    %p78 = por %p76, %p77
    %p80 = scmp.ne.s32.totalorder %s63, %s79
    %p81 = scmp.eq.s32.totalorder %s17, 0
    %p82 = por %p80, %p81
    %s83 = ssub.s32 %s18, %s30
    %p84 = scmp.eq.s32.totalorder %s83, 0
    %s86 = sadd.s32 %s85, 1
    %s87 = scalar_select %p84, %s85, %s86
    %p90 = pneg %p84
    %p91 = scmp.eq.s32.totalorder %s11, 1
    %p92 = por %p90, %p91
    %p93 = scmp.ne.s32.totalorder %s85, %s88
    %p94 = scmp.eq.s32.totalorder %s11, 0
    %p95 = por %p93, %p94
    %p96 = scmp.ne.s32.totalorder %s85, %s88
    %p97 = scmp.eq.s32.totalorder %s16, 1
    %p98 = por %p96, %p97
    %p99 = scmp.ne.s32.totalorder %s88, %s89
    %p100 = scmp.eq.s32.totalorder %s16, 0
    %p101 = por %p99, %p100
    %p102 = scmp.ne.s32.totalorder %s88, %s89
    %p103 = scmp.eq.s32.totalorder %s17, 1
    %p104 = por %p102, %p103
    %p106 = scmp.ne.s32.totalorder %s89, %s105
    %p107 = scmp.eq.s32.totalorder %s17, 0
    %p108 = por %p106, %p107
    %s109 = ssub.s32 %s18, %s30
    %s110 = ssub.s32 %s19, %s26
    %s111 = sor.u32 %s109, %s110
    %p112 = scmp.eq.s32.totalorder %s111, 0
    %s114 = sadd.s32 %s113, 1
    %s115 = scalar_select %p112, %s113, %s114
    %p118 = pneg %p112
    %p119 = scmp.eq.s32.totalorder %s11, 1
    %p120 = por %p118, %p119
    %p121 = scmp.ne.s32.totalorder %s113, %s116
    %p122 = scmp.eq.s32.totalorder %s11, 0
    %p123 = por %p121, %p122
    %p124 = scmp.ne.s32.totalorder %s113, %s116
    %p125 = scmp.eq.s32.totalorder %s16, 1
    %p126 = por %p124, %p125
    %p127 = scmp.ne.s32.totalorder %s116, %s117
    %p128 = scmp.eq.s32.totalorder %s16, 0
    %p129 = por %p127, %p128
    %p130 = scmp.ne.s32.totalorder %s116, %s117
    %p131 = scmp.eq.s32.totalorder %s17, 1
    %p132 = por %p130, %p131
    %p134 = scmp.ne.s32.totalorder %s117, %s133
    %p135 = scmp.eq.s32.totalorder %s17, 0
    %p136 = por %p134, %p135
    %s137 = ssub.s32 %s18, %s30
    %s138 = ssub.s32 %s19, %s26
    %s139 = sor.u32 %s137, %s138
    %p140 = scmp.eq.s32.totalorder %s139, 0
    %s142 = sadd.s32 %s141, 1
    %s143 = scalar_select %p140, %s141, %s142
    %p146 = pneg %p140
    %p147 = scmp.eq.s32.totalorder %s11, 1
    %p148 = por %p146, %p147
    %p149 = scmp.ne.s32.totalorder %s141, %s144
    %p150 = scmp.eq.s32.totalorder %s11, 0
    %p151 = por %p149, %p150
    %p152 = scmp.ne.s32.totalorder %s141, %s144
    %p153 = scmp.eq.s32.totalorder %s16, 1
    %p154 = por %p152, %p153
    %p155 = scmp.ne.s32.totalorder %s144, %s145
    %p156 = scmp.eq.s32.totalorder %s16, 0
    %p157 = por %p155, %p156
    %p158 = scmp.ne.s32.totalorder %s144, %s145
    %p159 = scmp.eq.s32.totalorder %s17, 1
    %p160 = por %p158, %p159
    %p162 = scmp.ne.s32.totalorder %s145, %s161
    %p163 = scmp.eq.s32.totalorder %s17, 0
    %p164 = por %p162, %p163
    %s165 = ssub.s32 %s18, %s30
    %s166 = ssub.s32 %s19, %s26
    %s167 = sor.u32 %s165, %s166
    %p168 = scmp.eq.s32.totalorder %s167, 0
    %s170 = sadd.s32 %s169, 1
    %s171 = scalar_select %p168, %s169, %s170
    %p174 = pneg %p168
    %p175 = scmp.eq.s32.totalorder %s11, 1
    %p176 = por %p174, %p175
    %p177 = scmp.ne.s32.totalorder %s169, %s172
    %p178 = scmp.eq.s32.totalorder %s11, 0
    %p179 = por %p177, %p178
    %p180 = scmp.ne.s32.totalorder %s169, %s172
    %p181 = scmp.eq.s32.totalorder %s16, 1
    %p182 = por %p180, %p181
    %p183 = scmp.ne.s32.totalorder %s172, %s173
    %p184 = scmp.eq.s32.totalorder %s16, 0
    %p185 = por %p183, %p184
    %p186 = scmp.ne.s32.totalorder %s172, %s173
    %p187 = scmp.eq.s32.totalorder %s17, 1
    %p188 = por %p186, %p187
    %p190 = scmp.ne.s32.totalorder %s173, %s189
    %p191 = scmp.eq.s32.totalorder %s17, 0
    %p192 = por %p190, %p191
    %p193 = scmp.le.s32.totalorder 1, %s11
    %p194 = scmp.lt.s32.totalorder %s11, 3
    %p195 = pnand %p193, %p194
    %p196 = pneg %p195
    // Predicated region
    $region9: #{self_supervised_head.2} parent=5 // pred_check
      _
    $region10: #{self_supervised_head.2} parent=5 // pred_check_branch
      %198 = sbr.rel (%p195) target = $region12
    $region11: #{self_supervised_head.2} parent=5 // pred_region
      %s199 = ssub.s32 %s11, 1
    $region12: #{self_supervised_head.2} parent=5 // pred_fallthru
      _
    %p200 = scmp.lt.s32.totalorder %s11, 2
    // Predicated region
    $region13: #{self_supervised_head.2} parent=5 // pred_check
      %p201 = pneg %p200
    $region14: #{self_supervised_head.2} parent=5 // pred_check_branch
      %203 = sbr.rel (%p201) target = $region16
    $region15: #{self_supervised_head.2} parent=5 // pred_region
      // Predicated region
      $region17: #{self_supervised_head.2} parent=15 // pred_check
        %p204 = pneg %p43
      $region18: #{self_supervised_head.2} parent=15 // pred_check_branch
        %206 = sbr.rel (%p204) target = $region20
      $region19: #{self_supervised_head.2} parent=15 // pred_region
        %p207 = scmp.lt.s32.totalorder %s18, 1
        %s208 = scalar_select %p207, %s18, 1
        %s209 = smul.addr %s208, 2
        %s210 = scalar_lea.vmem %s0, %s209
      $region20: #{self_supervised_head.2} parent=15 // pred_fallthru
        _
      // Predicated region
      $region21: #{self_supervised_head.2} parent=15 // pred_check
        %p211 = pneg %p69
      $region22: #{self_supervised_head.2} parent=15 // pred_check_branch
        %213 = sbr.rel (%p211) target = $region24
      $region23: #{self_supervised_head.2} parent=15 // pred_region
        %p214 = scmp.lt.s32.totalorder %s18, 1
        %s215 = scalar_select %p214, %s18, 1
        %s216 = smul.addr %s215, 4
        %s217 = smul.addr %s216, 8
        %s218 = scalar_lea.vmem %s1, %s217
      $region24: #{self_supervised_head.2} parent=15 // pred_fallthru
        _
      // Predicated region
      $region25: #{self_supervised_head.2} parent=15 // pred_check
        %p219 = pneg %p95
      $region26: #{self_supervised_head.2} parent=15 // pred_check_branch
        %221 = sbr.rel (%p219) target = $region28
      $region27: #{self_supervised_head.2} parent=15 // pred_region
        %p222 = scmp.lt.s32.totalorder %s18, 1
        %s223 = scalar_select %p222, %s18, 1
        %s224 = scalar_lea.vmem %s2, %s223
      $region28: #{self_supervised_head.2} parent=15 // pred_fallthru
        _
      // Predicated region
      $region29: #{self_supervised_head.2} parent=15 // pred_check
        %p225 = pneg %p123
      $region30: #{self_supervised_head.2} parent=15 // pred_check_branch
        %227 = sbr.rel (%p225) target = $region32
      $region31: #{self_supervised_head.2} parent=15 // pred_region
        %p228 = scmp.lt.s32.totalorder %s18, 1
        %s229 = scalar_select %p228, %s18, 1
        %p230 = scmp.lt.s32.totalorder %s19, 0
        %s231 = scalar_select %p230, %s19, 0
        %s232 = smul.addr %s229, 4
        %s233 = sadd.s32 %s231, %s232
        %s234 = smul.addr %s233, 8
        %s235 = scalar_lea.vmem %s3, %s234
      $region32: #{self_supervised_head.2} parent=15 // pred_fallthru
        _
      // Predicated region
      $region33: #{self_supervised_head.2} parent=15 // pred_check
        %p236 = pneg %p151
      $region34: #{self_supervised_head.2} parent=15 // pred_check_branch
        %238 = sbr.rel (%p236) target = $region36
      $region35: #{self_supervised_head.2} parent=15 // pred_region
        %p239 = scmp.lt.s32.totalorder %s18, 1
        %s240 = scalar_select %p239, %s18, 1
        %p241 = scmp.lt.s32.totalorder %s19, 0
        %s242 = scalar_select %p241, %s19, 0
        %s243 = sadd.s32 %s242, %s240
        %s244 = scalar_lea.vmem %s4, %s243
      $region36: #{self_supervised_head.2} parent=15 // pred_fallthru
        _
    $region16: #{self_supervised_head.2} parent=5 // pred_fallthru
      _
    %p245 = scmp.le.s32.totalorder 1, %s11
    %p246 = scmp.lt.s32.totalorder %s11, 3
    %p247 = pnand %p245, %p246
    %p248 = pneg %p247
    // Predicated region
    $region37: #{self_supervised_head.2} parent=5 // pred_check
      _
    $region38: #{self_supervised_head.2} parent=5 // pred_check_branch
      %250 = sbr.rel (%p247) target = $region40
    $region39: #{self_supervised_head.2} parent=5 // pred_region
      %s251 = ssub.s32 %s11, 1
      %p252 = scmp.lt.s32.totalorder %s20, 1
      %s253 = scalar_select %p252, %s20, 1
      %s254 = smul.addr %s253, 2
      %s255 = scalar_lea.vmem %s0, %s254
      %p256 = pneg %p49
      %p257 = pneg %p46
      %p258 = scmp.lt.s32.totalorder %s20, 1
      %s259 = scalar_select %p258, %s20, 1
      %s260 = smul.addr %s259, 4
      %s261 = smul.addr %s260, 8
      %s262 = scalar_lea.vmem %s1, %s261
      %p263 = pneg %p75
      %p264 = pneg %p72
      %p265 = scmp.lt.s32.totalorder %s20, 1
      %s266 = scalar_select %p265, %s20, 1
      %s267 = scalar_lea.vmem %s2, %s266
      %p268 = pneg %p101
      %p269 = pneg %p98
      %p270 = scmp.lt.s32.totalorder %s20, 1
      %s271 = scalar_select %p270, %s20, 1
      %p272 = scmp.lt.s32.totalorder %s21, 0
      %s273 = scalar_select %p272, %s21, 0
      %s274 = smul.addr %s271, 4
      %s275 = sadd.s32 %s273, %s274
      %s276 = smul.addr %s275, 8
      %s277 = scalar_lea.vmem %s3, %s276
      %p278 = pneg %p129
      %p279 = pneg %p126
      %p280 = scmp.lt.s32.totalorder %s20, 1
      %s281 = scalar_select %p280, %s20, 1
      %p282 = scmp.lt.s32.totalorder %s21, 0
      %s283 = scalar_select %p282, %s21, 0
      %s284 = sadd.s32 %s283, %s281
      %s285 = scalar_lea.vmem %s4, %s284
      %p286 = pneg %p157
      %p287 = pneg %p154
      %p288 = pneg %p185
      %p289 = pneg %p182
      %p290 = scmp.lt.s32.totalorder %s20, 1
      %s291 = scalar_select %p290, %s20, 1
      %p292 = scmp.lt.s32.totalorder %s21, 0
      %s293 = scalar_select %p292, %s21, 0
      %s294 = sadd.s32 %s293, %s291
      %s295 = smul.addr %s294, 2
      %s296 = scalar_lea.vmem %s5, %s295
      %p297 = scmp.lt.s32.totalorder %s20, 1
      %s298 = scalar_select %p297, %s20, 1
      %s299 = smul.addr %s298, 2
      %s300 = scalar_lea.vmem %s0, %s299
      %p301 = scmp.lt.s32.totalorder %s20, 1
      %s302 = scalar_select %p301, %s20, 1
      %s303 = smul.addr %s302, 4
      %s304 = smul.addr %s303, 8
      %s305 = scalar_lea.vmem %s1, %s304
      %p306 = scmp.lt.s32.totalorder %s20, 1
      %s307 = scalar_select %p306, %s20, 1
      %s308 = scalar_lea.vmem %s2, %s307
      %p309 = scmp.lt.s32.totalorder %s20, 1
      %s310 = scalar_select %p309, %s20, 1
      %p311 = scmp.lt.s32.totalorder %s21, 0
      %s312 = scalar_select %p311, %s21, 0
      %s313 = smul.addr %s310, 4
      %s314 = sadd.s32 %s312, %s313
      %s315 = smul.addr %s314, 8
      %s316 = scalar_lea.vmem %s3, %s315
      %p317 = scmp.lt.s32.totalorder %s20, 1
      %s318 = scalar_select %p317, %s20, 1
      %p319 = scmp.lt.s32.totalorder %s21, 0
      %s320 = scalar_select %p319, %s21, 0
      %s321 = sadd.s32 %s320, %s318
      %s322 = scalar_lea.vmem %s4, %s321
      %p323 = scmp.lt.s32.totalorder %s20, 1
      %s324 = scalar_select %p323, %s20, 1
      %p325 = scmp.lt.s32.totalorder %s21, 0
      %s326 = scalar_select %p325, %s21, 0
      %s327 = sadd.s32 %s326, %s324
      %s328 = smul.addr %s327, 2
      %s329 = scalar_lea.vmem %s5, %s328
      %p330 = scmp.eq.s32.totalorder %s21, 0
      // Predicated region
      $region41: #{self_supervised_head.2} parent=39 // pred_check
        %p331 = pneg %p330
      $region42: #{self_supervised_head.2} parent=39 // pred_check_branch
        %333 = sbr.rel (%p331) target = $region44
      $region43: #{self_supervised_head.2} parent=39 // pred_region
        %v334 = vld [vmem:[%s300] sm:$0x3]
        %v335 = vld [vmem:[%s305] sm:$0xff]
        %v336 = vld [vmem:[%s305 + $0x8] sm:$0xff]
        %v337 = vld [vmem:[%s305 + $0x10] sm:$0xff]
        %v338 = vld [vmem:[%s305 + $0x18] sm:$0xff]
        %v339 = vld [vmem:[%s308] sm:$0x1]
        %v341 = vlaneseq
        %v342 = vshrl.u32 %v341, 7
        %v343 = vsub.s32 0, %v342
        %v344 = vrot.slane %v339, %v343
        %vm346 = vcmask 261120
        %v348 = vsel %vm346, %v334, 0
        %350 = vmatprep.subr.mxu0 0.0
        %351 = vmatpush1.msra.mxu0 %v335
        %352 = vmatprep.subr.mxu0 0.0
        %353 = vmatpush1.msra.mxu0 %v336
        %354 = vmatprep.subr.mxu0 0.0
        %355 = vmatpush1.msra.mxu0 %v337
        %356 = vmatprep.subr.mxu0 0.0
        %357 = vmatpush1.msra.mxu0 %v338
        %358 = vmatprep.subr.mxu0 0.0
        %359 = vmatpush1.msra.mxu0 0.0
        %360 = vmatprep.subr.mxu0 0.0
        %361 = vmatpush1.msra.mxu0 0.0
        %362 = vmatprep.subr.mxu0 0.0
        %363 = vmatpush1.msra.mxu0 0.0
        %364 = vmatprep.subr.mxu0 0.0
        %365 = vmatpush1.msra.mxu0 0.0
        %366 = vmatprep.subr.mxu0 0.0
        %367 = vmatpush1.msra.mxu0 0.0
        %368 = vmatprep.subr.mxu0 0.0
        %369 = vmatpush1.msra.mxu0 0.0
        %370 = vmatprep.subr.mxu0 0.0
        %371 = vmatpush1.msra.mxu0 0.0
        %372 = vmatprep.subr.mxu0 0.0
        %373 = vmatpush1.msra.mxu0 0.0
        %374 = vmatprep.subr.mxu0 0.0
        %375 = vmatpush1.msra.mxu0 0.0
        %376 = vmatprep.subr.mxu0 0.0
        %377 = vmatpush1.msra.mxu0 0.0
        %378 = vmatprep.subr.mxu0 0.0
        %379 = vmatpush1.msra.mxu0 0.0
        %380 = vmatprep.subr.mxu0 0.0
        %381 = vmatpush1.msra.mxu0 0.0
        %382 = vmatprep.subr.mxu0 0.0
        %383 = vmatpush1.msra.mxu0 0.0
        %384 = vmatprep.subr.mxu0 0.0
        %385 = vmatpush1.msra.mxu0 0.0
        %386 = vmatprep.subr.mxu0 0.0
        %387 = vmatpush1.msra.mxu0 0.0
        %388 = vmatprep.subr.mxu0 0.0
        %389 = vmatpush1.msra.mxu0 0.0
        %390 = vmatprep.subr.mxu0 0.0
        %391 = vmatpush1.msra.mxu0 0.0
        %392 = vmatprep.subr.mxu0 0.0
        %393 = vmatpush1.msra.mxu0 0.0
        %394 = vmatprep.subr.mxu0 0.0
        %395 = vmatpush1.msra.mxu0 0.0
        %396 = vmatprep.subr.mxu0 0.0
        %397 = vmatpush1.msra.mxu0 0.0
        %398 = vmatprep.subr.mxu0 0.0
        %399 = vmatpush1.msra.mxu0 0.0
        %400 = vmatprep.subr.mxu0 0.0
        %401 = vmatpush1.msra.mxu0 0.0
        %402 = vmatprep.subr.mxu0 0.0
        %403 = vmatpush1.msra.mxu0 0.0
        %404 = vmatprep.subr.mxu0 0.0
        %405 = vmatpush1.msra.mxu0 0.0
        %406 = vmatprep.subr.mxu0 0.0
        %407 = vmatpush1.msra.mxu0 0.0
        %408 = vmatprep.subr.mxu0 0.0
        %409 = vmatpush1.msra.mxu0 0.0
        %410 = vmatprep.subr.mxu0 0.0
        %411 = vmatpush1.msra.mxu0 0.0
        %412 = vmatprep.subr.mxu0 0.0
        %413 = vmatpush1.msra.mxu0 0.0
        %414 = vmatprep.mubr.f32.mxu0 0.0
        %415 = vmatmul.mubr.f32.gmra.mrb[0].mxu0 %v348
        %v416 = vpop.f32.mrb[0].mxu0
        %v417 = vadd.f32 %v344, %v416
        %v418 = vpop.f32.mrb[0].mxu0
        %419 = vdwg.mxu0
        %v420 = vmax.f32 %v417, 0.0
        %vm421 = vcmask 254976
        %422 = vst.msk [vmem:[#allocation2] sm:$0x3] %vm421, %v420
      $region44: #{self_supervised_head.2} parent=39 // pred_fallthru
        _
      %v423 = vld [vmem:[#allocation2] sm:$0x3]
      %v424 = vld [vmem:[%s316] sm:$0xff]
      %v425 = vld [vmem:[%s316 + $0x8] sm:$0xff]
      %v426 = vld [vmem:[%s316 + $0x10] sm:$0xff]
      %v427 = vld [vmem:[%s316 + $0x18] sm:$0xff]
      %v428 = vld [vmem:[%s322] sm:$0x1]
      %v430 = vlaneseq
      %v431 = vshrl.u32 %v430, 7
      %v432 = vsub.s32 0, %v431
      %v433 = vrot.slane %v428, %v432
      %vm435 = vcmask 261120
      %v437 = vsel %vm435, %v423, 0
      %439 = vmatprep.subr.mxu0 0.0
      %440 = vmatpush1.msra.mxu0 %v424
      %441 = vmatprep.subr.mxu0 0.0
      %442 = vmatpush1.msra.mxu0 %v425
      %443 = vmatprep.subr.mxu0 0.0
      %444 = vmatpush1.msra.mxu0 %v426
      %445 = vmatprep.subr.mxu0 0.0
      %446 = vmatpush1.msra.mxu0 %v427
      %447 = vmatprep.subr.mxu0 0.0
      %448 = vmatpush1.msra.mxu0 0.0
      %449 = vmatprep.subr.mxu0 0.0
      %450 = vmatpush1.msra.mxu0 0.0
      %451 = vmatprep.subr.mxu0 0.0
      %452 = vmatpush1.msra.mxu0 0.0
      %453 = vmatprep.subr.mxu0 0.0
      %454 = vmatpush1.msra.mxu0 0.0
      %455 = vmatprep.subr.mxu0 0.0
      %456 = vmatpush1.msra.mxu0 0.0
      %457 = vmatprep.subr.mxu0 0.0
      %458 = vmatpush1.msra.mxu0 0.0
      %459 = vmatprep.subr.mxu0 0.0
      %460 = vmatpush1.msra.mxu0 0.0
      %461 = vmatprep.subr.mxu0 0.0
      %462 = vmatpush1.msra.mxu0 0.0
      %463 = vmatprep.subr.mxu0 0.0
      %464 = vmatpush1.msra.mxu0 0.0
      %465 = vmatprep.subr.mxu0 0.0
      %466 = vmatpush1.msra.mxu0 0.0
      %467 = vmatprep.subr.mxu0 0.0
      %468 = vmatpush1.msra.mxu0 0.0
      %469 = vmatprep.subr.mxu0 0.0
      %470 = vmatpush1.msra.mxu0 0.0
      %471 = vmatprep.subr.mxu0 0.0
      %472 = vmatpush1.msra.mxu0 0.0
      %473 = vmatprep.subr.mxu0 0.0
      %474 = vmatpush1.msra.mxu0 0.0
      %475 = vmatprep.subr.mxu0 0.0
      %476 = vmatpush1.msra.mxu0 0.0
      %477 = vmatprep.subr.mxu0 0.0
      %478 = vmatpush1.msra.mxu0 0.0
      %479 = vmatprep.subr.mxu0 0.0
      %480 = vmatpush1.msra.mxu0 0.0
      %481 = vmatprep.subr.mxu0 0.0
      %482 = vmatpush1.msra.mxu0 0.0
      %483 = vmatprep.subr.mxu0 0.0
      %484 = vmatpush1.msra.mxu0 0.0
      %485 = vmatprep.subr.mxu0 0.0
      %486 = vmatpush1.msra.mxu0 0.0
      %487 = vmatprep.subr.mxu0 0.0
      %488 = vmatpush1.msra.mxu0 0.0
      %489 = vmatprep.subr.mxu0 0.0
      %490 = vmatpush1.msra.mxu0 0.0
      %491 = vmatprep.subr.mxu0 0.0
      %492 = vmatpush1.msra.mxu0 0.0
      %493 = vmatprep.subr.mxu0 0.0
      %494 = vmatpush1.msra.mxu0 0.0
      %495 = vmatprep.subr.mxu0 0.0
      %496 = vmatpush1.msra.mxu0 0.0
      %497 = vmatprep.subr.mxu0 0.0
      %498 = vmatpush1.msra.mxu0 0.0
      %499 = vmatprep.subr.mxu0 0.0
      %500 = vmatpush1.msra.mxu0 0.0
      %501 = vmatprep.subr.mxu0 0.0
      %502 = vmatpush1.msra.mxu0 0.0
      %503 = vmatprep.mubr.f32.mxu0 0.0
      %504 = vmatmul.mubr.f32.gmra.mrb[0].mxu0 %v437
      %v505 = vpop.f32.mrb[0].mxu0
      %v506 = vadd.f32 %v433, %v505
      %v507 = vpop.f32.mrb[0].mxu0
      %508 = vdwg.mxu0
      %509 = vst [vmem:[%s329] sm:$0x3] %v506
      %p510 = scmp.lt.s32.totalorder %s20, 1
      %s511 = scalar_select %p510, %s20, 1
      %p512 = scmp.lt.s32.totalorder %s21, 0
      %s513 = scalar_select %p512, %s21, 0
      %s514 = sadd.s32 %s513, %s511
      %s515 = smul.addr %s514, 2
      %s516 = scalar_lea.vmem %s5, %s515
      // Predicated region
      $region45: #{self_supervised_head.2} parent=39 // pred_check
        %p517 = pneg %p182
      $region46: #{self_supervised_head.2} parent=39 // pred_check_branch
        %519 = sbr.rel (%p517) target = $region48
      $region47: #{self_supervised_head.2} parent=39 // pred_region
        _
      $region48: #{self_supervised_head.2} parent=39 // pred_fallthru
        _
    $region40: #{self_supervised_head.2} parent=5 // pred_fallthru
      _
    %p520 = scmp.le.s32.totalorder 2, %s11
    // Predicated region
    $region49: #{self_supervised_head.2} parent=5 // pred_check
      %p521 = pneg %p520
    $region50: #{self_supervised_head.2} parent=5 // pred_check_branch
      %523 = sbr.rel (%p521) target = $region52
    $region51: #{self_supervised_head.2} parent=5 // pred_region
      %s524 = ssub.s32 %s11, 2
      // Predicated region
      $region53: #{self_supervised_head.2} parent=51 // pred_check
        %p525 = pneg %p188
      $region54: #{self_supervised_head.2} parent=51 // pred_check_branch
        %527 = sbr.rel (%p525) target = $region56
      $region55: #{self_supervised_head.2} parent=51 // pred_region
        %p528 = scmp.lt.s32.totalorder %s22, 1
        %s529 = scalar_select %p528, %s22, 1
        %p530 = scmp.lt.s32.totalorder %s23, 0
        %s531 = scalar_select %p530, %s23, 0
        %s532 = sadd.s32 %s531, %s529
        %s533 = smul.addr %s532, 2
        %s534 = scalar_lea.vmem %s5, %s533
      $region56: #{self_supervised_head.2} parent=51 // pred_fallthru
        _
    $region52: #{self_supervised_head.2} parent=5 // pred_fallthru
      _
  $region6: #{self_supervised_head.2} parent=0 // loop_footer
    %s15 = sadd.s32 1, %s11
  $region7: #{self_supervised_head.2} parent=0 // loop_footer_branch
    %10 = sbr.rel target = $region3
  $region8: #{self_supervised_head.2} parent=0 // loop_exit
    _

// kernel: self_supervised_head.3
$region0: #{self_supervised_head.3}
  #allocation0 [shape = 'u32[]', space=smem, size = 0x4, offset = 0x4, fixed_abs, tag = 'smem constant byte address 0x4 - core index']
  #allocation1 [shape = 'u32[144,128]{1,0:T(1,128)}', space=vmem, size = 0x12000, scoped, tag = 'internal scratch']
  #allocation2 [shape = 'f32[2,32]{1,0:T(2,128)}', space=vmem, size = 0x400, scoped, tag = 'scratch operand']
  %s0 = inlined_call_operand.vmem [shape: f32[2,2,32], index: 0, kind: input, shape index: {}]
  %s1 = inlined_call_operand.hbm [shape: f32[2,32,32], index: 1, kind: input, shape index: {}]
  %s2 = inlined_call_operand.vmem [shape: f32[2,1,32], index: 2, kind: input, shape index: {}]
  %s3 = inlined_call_operand.hbm [shape: f32[2,32,128], index: 3, kind: input, shape index: {}]
  %s4 = inlined_call_operand.vmem [shape: f32[2,1,128], index: 4, kind: input, shape index: {}]
  %s5 = inlined_call_operand.vmem [shape: f32[2,2,128], index: 5, kind: output, shape index: {}]
  %s6 = sld [smem:[#allocation0]]
  $region65: #{self_supervised_head.3} parent=0
    _
  %s8 = ssub.s32 1, %s6
  %s9 = scalar_select 0, %s8, %s6
  $region1: #{self_supervised_head.3} parent=0
    #allocation3 [shape = 'u8[32768]{0}', space=vmem, size = 0x8000, scoped, tag = 'input window, operand 1']
    #allocation4 [shape = 's32[2]{0}', space=sflag, size = 0x8, scoped, tag = 'scoped memory for self_supervised_head.3']
    #allocation5 [shape = 'u8[32768]{0}', space=vmem, size = 0x8000, scoped, tag = 'input window, operand 3']
    #allocation6 [shape = 's32[2]{0}', space=sflag, size = 0x8, scoped, tag = 'scoped memory for self_supervised_head.3']
    %10 = vsyncpa [#allocation4], 0
    %s11 = scalar_lea.sflag [#allocation4], 1
    %12 = vsyncpa %s11, 0
    %13 = vsyncpa [#allocation6], 0
    %s14 = scalar_lea.sflag [#allocation6], 1
    %15 = vsyncpa %s14, 0
    loop: start=0, step=1, limit=4
    $region2: #{self_supervised_head.3} parent=1 // loop_pre_header
      _
    $region3: #{self_supervised_head.3} parent=1 // loop_header
      %s17 = sphi 0, %s21
      %p18 = scmp.ge.s32.totalorder %s17, 4
      %s24 = sphi 0, %s36
      %s25 = sphi 0, %s32
      %s26 = sphi 0, %s24
      %s27 = sphi 0, %s25
      %s28 = sphi 0, %s26
      %s29 = sphi 0, %s27
      %s39 = sphi 0, %s41
      %s42 = sphi 0, %s39
      %s43 = sphi 0, %s42
      %s59 = sphi 0, %s43
      %s65 = sphi 0, %s67
      %s68 = sphi 0, %s65
      %s69 = sphi 0, %s68
      %s85 = sphi 0, %s69
      %s91 = sphi 0, %s93
      %s94 = sphi 0, %s91
      %s95 = sphi 0, %s94
      %s111 = sphi 0, %s95
      %s119 = sphi 0, %s121
      %s122 = sphi 0, %s119
      %s123 = sphi 0, %s122
      %s139 = sphi 0, %s123
      %s147 = sphi 0, %s149
      %s150 = sphi 0, %s147
      %s151 = sphi 0, %s150
      %s167 = sphi 0, %s151
      %s175 = sphi 0, %s177
      %s178 = sphi 0, %s175
      %s179 = sphi 0, %s178
      %s195 = sphi 0, %s179
    $region4: #{self_supervised_head.3} parent=1 // loop_header_branch
      %20 = sbr.rel (%p18) target = $region8
    $region5: #{self_supervised_head.3} parent=1 // loop_body
      %s22 = ssub.s32 %s17, 1
      %s23 = ssub.s32 %s17, 2
      %s30 = sadd.s32 1, %s25
      %p31 = scmp.ge.s32.totalorder %s30, 1
      %s32 = scalar_select %p31, 0, %s30
      %s33 = sadd.s32 1, %s24
      %s34 = scalar_select %p31, %s33, %s24
      %p35 = scmp.ge.s32.totalorder %s34, 2
      %s36 = scalar_select %p35, 0, %s34
      %s37 = ssub.s32 %s24, %s36
      %p38 = scmp.eq.s32.totalorder %s37, 0
      %s40 = sadd.s32 %s39, 1
      %s41 = scalar_select %p38, %s39, %s40
      %p44 = pneg %p38
      %p45 = scmp.eq.s32.totalorder %s17, 1
      %p46 = por %p44, %p45
      %p47 = scmp.ne.s32.totalorder %s39, %s42
      %p48 = scmp.eq.s32.totalorder %s17, 0
      %p49 = por %p47, %p48
      %p50 = scmp.ne.s32.totalorder %s39, %s42
      %p51 = scmp.eq.s32.totalorder %s22, 1
      %p52 = por %p50, %p51
      %p53 = scmp.ne.s32.totalorder %s42, %s43
      %p54 = scmp.eq.s32.totalorder %s22, 0
      %p55 = por %p53, %p54
      %p56 = scmp.ne.s32.totalorder %s42, %s43
      %p57 = scmp.eq.s32.totalorder %s23, 1
      %p58 = por %p56, %p57
      %p60 = scmp.ne.s32.totalorder %s43, %s59
      %p61 = scmp.eq.s32.totalorder %s23, 0
      %p62 = por %p60, %p61
      %s63 = ssub.s32 %s24, %s36
      %p64 = scmp.eq.s32.totalorder %s63, 0
      %s66 = sadd.s32 %s65, 1
      %s67 = scalar_select %p64, %s65, %s66
      %p70 = pneg %p64
      %p71 = scmp.eq.s32.totalorder %s17, 1
      %p72 = por %p70, %p71
      %p73 = scmp.ne.s32.totalorder %s65, %s68
      %p74 = scmp.eq.s32.totalorder %s17, 0
      %p75 = por %p73, %p74
      %p76 = scmp.ne.s32.totalorder %s65, %s68
      %p77 = scmp.eq.s32.totalorder %s22, 1
      %p78 = por %p76, %p77
      %p79 = scmp.ne.s32.totalorder %s68, %s69
      %p80 = scmp.eq.s32.totalorder %s22, 0
      %p81 = por %p79, %p80
      %p82 = scmp.ne.s32.totalorder %s68, %s69
      %p83 = scmp.eq.s32.totalorder %s23, 1
      %p84 = por %p82, %p83
      %p86 = scmp.ne.s32.totalorder %s69, %s85
      %p87 = scmp.eq.s32.totalorder %s23, 0
      %p88 = por %p86, %p87
      %s89 = ssub.s32 %s24, %s36
      %p90 = scmp.eq.s32.totalorder %s89, 0
      %s92 = sadd.s32 %s91, 1
      %s93 = scalar_select %p90, %s91, %s92
      %p96 = pneg %p90
      %p97 = scmp.eq.s32.totalorder %s17, 1
      %p98 = por %p96, %p97
      %p99 = scmp.ne.s32.totalorder %s91, %s94
      %p100 = scmp.eq.s32.totalorder %s17, 0
      %p101 = por %p99, %p100
      %p102 = scmp.ne.s32.totalorder %s91, %s94
      %p103 = scmp.eq.s32.totalorder %s22, 1
      %p104 = por %p102, %p103
      %p105 = scmp.ne.s32.totalorder %s94, %s95
      %p106 = scmp.eq.s32.totalorder %s22, 0
      %p107 = por %p105, %p106
      %p108 = scmp.ne.s32.totalorder %s94, %s95
      %p109 = scmp.eq.s32.totalorder %s23, 1
      %p110 = por %p108, %p109
      %p112 = scmp.ne.s32.totalorder %s95, %s111
      %p113 = scmp.eq.s32.totalorder %s23, 0
      %p114 = por %p112, %p113
      %s115 = ssub.s32 %s24, %s36
      %s116 = ssub.s32 %s25, %s32
      %s117 = sor.u32 %s115, %s116
      %p118 = scmp.eq.s32.totalorder %s117, 0
      %s120 = sadd.s32 %s119, 1
      %s121 = scalar_select %p118, %s119, %s120
      %p124 = pneg %p118
      %p125 = scmp.eq.s32.totalorder %s17, 1
      %p126 = por %p124, %p125
      %p127 = scmp.ne.s32.totalorder %s119, %s122
      %p128 = scmp.eq.s32.totalorder %s17, 0
      %p129 = por %p127, %p128
      %p130 = scmp.ne.s32.totalorder %s119, %s122
      %p131 = scmp.eq.s32.totalorder %s22, 1
      %p132 = por %p130, %p131
      %p133 = scmp.ne.s32.totalorder %s122, %s123
      %p134 = scmp.eq.s32.totalorder %s22, 0
      %p135 = por %p133, %p134
      %p136 = scmp.ne.s32.totalorder %s122, %s123
      %p137 = scmp.eq.s32.totalorder %s23, 1
      %p138 = por %p136, %p137
      %p140 = scmp.ne.s32.totalorder %s123, %s139
      %p141 = scmp.eq.s32.totalorder %s23, 0
      %p142 = por %p140, %p141
      %s143 = ssub.s32 %s24, %s36
      %s144 = ssub.s32 %s25, %s32
      %s145 = sor.u32 %s143, %s144
      %p146 = scmp.eq.s32.totalorder %s145, 0
      %s148 = sadd.s32 %s147, 1
      %s149 = scalar_select %p146, %s147, %s148
      %p152 = pneg %p146
      %p153 = scmp.eq.s32.totalorder %s17, 1
      %p154 = por %p152, %p153
      %p155 = scmp.ne.s32.totalorder %s147, %s150
      %p156 = scmp.eq.s32.totalorder %s17, 0
      %p157 = por %p155, %p156
      %p158 = scmp.ne.s32.totalorder %s147, %s150
      %p159 = scmp.eq.s32.totalorder %s22, 1
      %p160 = por %p158, %p159
      %p161 = scmp.ne.s32.totalorder %s150, %s151
      %p162 = scmp.eq.s32.totalorder %s22, 0
      %p163 = por %p161, %p162
      %p164 = scmp.ne.s32.totalorder %s150, %s151
      %p165 = scmp.eq.s32.totalorder %s23, 1
      %p166 = por %p164, %p165
      %p168 = scmp.ne.s32.totalorder %s151, %s167
      %p169 = scmp.eq.s32.totalorder %s23, 0
      %p170 = por %p168, %p169
      %s171 = ssub.s32 %s24, %s36
      %s172 = ssub.s32 %s25, %s32
      %s173 = sor.u32 %s171, %s172
      %p174 = scmp.eq.s32.totalorder %s173, 0
      %s176 = sadd.s32 %s175, 1
      %s177 = scalar_select %p174, %s175, %s176
      %p180 = pneg %p174
      %p181 = scmp.eq.s32.totalorder %s17, 1
      %p182 = por %p180, %p181
      %p183 = scmp.ne.s32.totalorder %s175, %s178
      %p184 = scmp.eq.s32.totalorder %s17, 0
      %p185 = por %p183, %p184
      %p186 = scmp.ne.s32.totalorder %s175, %s178
      %p187 = scmp.eq.s32.totalorder %s22, 1
      %p188 = por %p186, %p187
      %p189 = scmp.ne.s32.totalorder %s178, %s179
      %p190 = scmp.eq.s32.totalorder %s22, 0
      %p191 = por %p189, %p190
      %p192 = scmp.ne.s32.totalorder %s178, %s179
      %p193 = scmp.eq.s32.totalorder %s23, 1
      %p194 = por %p192, %p193
      %p196 = scmp.ne.s32.totalorder %s179, %s195
      %p197 = scmp.eq.s32.totalorder %s23, 0
      %p198 = por %p196, %p197
      %p199 = scmp.le.s32.totalorder 1, %s17
      %p200 = scmp.lt.s32.totalorder %s17, 3
      %p201 = pnand %p199, %p200
      %p202 = pneg %p201
      // Predicated region
      $region9: #{self_supervised_head.3} parent=5 // pred_check
        _
      $region10: #{self_supervised_head.3} parent=5 // pred_check_branch
        %204 = sbr.rel (%p201) target = $region12
      $region11: #{self_supervised_head.3} parent=5 // pred_region
        %s205 = ssub.s32 %s17, 1
      $region12: #{self_supervised_head.3} parent=5 // pred_fallthru
        _
      %p206 = scmp.lt.s32.totalorder %s17, 2
      // Predicated region
      $region13: #{self_supervised_head.3} parent=5 // pred_check
        %p207 = pneg %p206
      $region14: #{self_supervised_head.3} parent=5 // pred_check_branch
        %209 = sbr.rel (%p207) target = $region16
      $region15: #{self_supervised_head.3} parent=5 // pred_region
        // Predicated region
        $region17: #{self_supervised_head.3} parent=15 // pred_check
          %p210 = pneg %p49
        $region18: #{self_supervised_head.3} parent=15 // pred_check_branch
          %212 = sbr.rel (%p210) target = $region20
        $region19: #{self_supervised_head.3} parent=15 // pred_region
          %p213 = scmp.lt.s32.totalorder %s24, 1
          %s214 = scalar_select %p213, %s24, 1
          %s215 = smul.addr %s214, 2
          %s216 = scalar_lea.vmem %s0, %s215
        $region20: #{self_supervised_head.3} parent=15 // pred_fallthru
          _
        // Predicated region
        $region21: #{self_supervised_head.3} parent=15 // pred_check
          %p217 = pneg %p75
        $region22: #{self_supervised_head.3} parent=15 // pred_check_branch
          %219 = sbr.rel (%p217) target = $region24
        $region23: #{self_supervised_head.3} parent=15 // pred_region
          %s220 = sand.u32 %s65, 1
          %s221 = scalar_lea.sflag [#allocation4], %s220
          %s222 = sand.u32 %s65, 1
          %s223 = smul.addr %s222, 32
          %s224 = scalar_lea.vmem [#allocation3], %s223
          %s226 = ssub.s32 512, 512
          %227 = vsyncadd %s221, %s226
          %s228 = smul.addr %s24, 4
          %s229 = smul.addr %s228, 128
          %s230 = scalar_lea.hbm %s1, %s229
          %s231 = sshll.u32 %s224, 4
          %s232 = int_to_ptr.vmem [resolvable:$true] %s231
          %237 = dma.hbm_to_vmem [thread:$0]  %s230, 512, %s232, %s221, 128, 128, 8
        $region24: #{self_supervised_head.3} parent=15 // pred_fallthru
          _
        // Predicated region
        $region25: #{self_supervised_head.3} parent=15 // pred_check
          %p238 = pneg %p101
        $region26: #{self_supervised_head.3} parent=15 // pred_check_branch
          %240 = sbr.rel (%p238) target = $region28
        $region27: #{self_supervised_head.3} parent=15 // pred_region
          %p241 = scmp.lt.s32.totalorder %s24, 1
          %s242 = scalar_select %p241, %s24, 1
          %s243 = scalar_lea.vmem %s2, %s242
        $region28: #{self_supervised_head.3} parent=15 // pred_fallthru
          _
        // Predicated region
        $region29: #{self_supervised_head.3} parent=15 // pred_check
          %p244 = pneg %p129
        $region30: #{self_supervised_head.3} parent=15 // pred_check_branch
          %246 = sbr.rel (%p244) target = $region32
        $region31: #{self_supervised_head.3} parent=15 // pred_region
          %s247 = sand.u32 %s119, 1
          %s248 = scalar_lea.sflag [#allocation6], %s247
          %s249 = sand.u32 %s119, 1
          %s250 = smul.addr %s249, 32
          %s251 = scalar_lea.vmem [#allocation5], %s250
          %s253 = ssub.s32 512, 512
          %254 = vsyncadd %s248, %s253
          %s255 = smul.addr %s24, 4
          %s256 = sadd.s32 %s25, %s255
          %s257 = smul.addr %s256, 128
          %s258 = scalar_lea.hbm %s3, %s257
          %s259 = sshll.u32 %s251, 4
          %s260 = int_to_ptr.vmem [resolvable:$true] %s259
          %265 = dma.hbm_to_vmem [thread:$0]  %s258, 512, %s260, %s248, 128, 128, 8
        $region32: #{self_supervised_head.3} parent=15 // pred_fallthru
          _
        // Predicated region
        $region33: #{self_supervised_head.3} parent=15 // pred_check
          %p266 = pneg %p157
        $region34: #{self_supervised_head.3} parent=15 // pred_check_branch
          %268 = sbr.rel (%p266) target = $region36
        $region35: #{self_supervised_head.3} parent=15 // pred_region
          %p269 = scmp.lt.s32.totalorder %s24, 1
          %s270 = scalar_select %p269, %s24, 1
          %p271 = scmp.lt.s32.totalorder %s25, 0
          %s272 = scalar_select %p271, %s25, 0
          %s273 = sadd.s32 %s272, %s270
          %s274 = scalar_lea.vmem %s4, %s273
        $region36: #{self_supervised_head.3} parent=15 // pred_fallthru
          _
      $region16: #{self_supervised_head.3} parent=5 // pred_fallthru
        _
      %p275 = scmp.le.s32.totalorder 1, %s17
      %p276 = scmp.lt.s32.totalorder %s17, 3
      %p277 = pnand %p275, %p276
      %p278 = pneg %p277
      // Predicated region
      $region37: #{self_supervised_head.3} parent=5 // pred_check
        _
      $region38: #{self_supervised_head.3} parent=5 // pred_check_branch
        %280 = sbr.rel (%p277) target = $region40
      $region39: #{self_supervised_head.3} parent=5 // pred_region
        %s281 = ssub.s32 %s17, 1
        %s282 = sand.u32 %s68, 1
        %s283 = scalar_lea.sflag [#allocation4], %s282
        %s284 = sand.u32 %s68, 1
        %s285 = smul.addr %s284, 32
        %s286 = scalar_lea.vmem [#allocation3], %s285
        // Predicated region
        $region41: #{self_supervised_head.3} parent=39 // pred_check
          %p287 = pneg %p81
        $region42: #{self_supervised_head.3} parent=39 // pred_check_branch
          %289 = sbr.rel (%p287) target = $region44
        $region43: #{self_supervised_head.3} parent=39 // pred_region
          %290 = dma.done %s283, 512
        $region44: #{self_supervised_head.3} parent=39 // pred_fallthru
          _
        %s291 = sand.u32 %s122, 1
        %s292 = scalar_lea.sflag [#allocation6], %s291
        %s293 = sand.u32 %s122, 1
        %s294 = smul.addr %s293, 32
        %s295 = scalar_lea.vmem [#allocation5], %s294
        // Predicated region
        $region45: #{self_supervised_head.3} parent=39 // pred_check
          %p296 = pneg %p135
        $region46: #{self_supervised_head.3} parent=39 // pred_check_branch
          %298 = sbr.rel (%p296) target = $region48
        $region47: #{self_supervised_head.3} parent=39 // pred_region
          %299 = dma.done %s292, 512
        $region48: #{self_supervised_head.3} parent=39 // pred_fallthru
          _
        %p300 = scmp.lt.s32.totalorder %s26, 1
        %s301 = scalar_select %p300, %s26, 1
        %s302 = smul.addr %s301, 2
        %s303 = scalar_lea.vmem %s0, %s302
        %p304 = pneg %p55
        %p305 = pneg %p52
        %s306 = sand.u32 %s68, 1
        %s307 = scalar_lea.sflag [#allocation4], %s306
        %s308 = sand.u32 %s68, 1
        %s309 = smul.addr %s308, 32
        %s310 = scalar_lea.vmem [#allocation3], %s309
        %p311 = pneg %p81
        %p312 = pneg %p78
        %p313 = scmp.lt.s32.totalorder %s26, 1
        %s314 = scalar_select %p313, %s26, 1
        %s315 = scalar_lea.vmem %s2, %s314
        %p316 = pneg %p107
        %p317 = pneg %p104
        %s318 = sand.u32 %s122, 1
        %s319 = scalar_lea.sflag [#allocation6], %s318
        %s320 = sand.u32 %s122, 1
        %s321 = smul.addr %s320, 32
        %s322 = scalar_lea.vmem [#allocation5], %s321
        %p323 = pneg %p135
        %p324 = pneg %p132
        %p325 = scmp.lt.s32.totalorder %s26, 1
        %s326 = scalar_select %p325, %s26, 1
        %p327 = scmp.lt.s32.totalorder %s27, 0
        %s328 = scalar_select %p327, %s27, 0
        %s329 = sadd.s32 %s328, %s326
        %s330 = scalar_lea.vmem %s4, %s329
        %p331 = pneg %p163
        %p332 = pneg %p160
        %p333 = pneg %p191
        %p334 = pneg %p188
        %p335 = scmp.lt.s32.totalorder %s26, 1
        %s336 = scalar_select %p335, %s26, 1
        %p337 = scmp.lt.s32.totalorder %s27, 0
        %s338 = scalar_select %p337, %s27, 0
        %s339 = sadd.s32 %s338, %s336
        %s340 = smul.addr %s339, 2
        %s341 = scalar_lea.vmem %s5, %s340
        %p342 = scmp.lt.s32.totalorder %s26, 1
        %s343 = scalar_select %p342, %s26, 1
        %s344 = smul.addr %s343, 2
        %s345 = scalar_lea.vmem %s0, %s344
        %p346 = scmp.lt.s32.totalorder %s26, 1
        %s347 = scalar_select %p346, %s26, 1
        %s348 = scalar_lea.vmem %s2, %s347
        %p349 = scmp.lt.s32.totalorder %s26, 1
        %s350 = scalar_select %p349, %s26, 1
        %p351 = scmp.lt.s32.totalorder %s27, 0
        %s352 = scalar_select %p351, %s27, 0
        %s353 = sadd.s32 %s352, %s350
        %s354 = scalar_lea.vmem %s4, %s353
        %p355 = scmp.lt.s32.totalorder %s26, 1
        %s356 = scalar_select %p355, %s26, 1
        %p357 = scmp.lt.s32.totalorder %s27, 0
        %s358 = scalar_select %p357, %s27, 0
        %s359 = sadd.s32 %s358, %s356
        %s360 = smul.addr %s359, 2
        %s361 = scalar_lea.vmem %s5, %s360
        %p362 = scmp.eq.s32.totalorder %s27, 0
        // Predicated region
        $region49: #{self_supervised_head.3} parent=39 // pred_check
          %p363 = pneg %p362
        $region50: #{self_supervised_head.3} parent=39 // pred_check_branch
          %365 = sbr.rel (%p363) target = $region52
        $region51: #{self_supervised_head.3} parent=39 // pred_region
          %v366 = vld [vmem:[%s345] sm:$0x3]
          %v367 = vld [vmem:[%s286] sm:$0xff]
          %v368 = vld [vmem:[%s286 + $0x8] sm:$0xff]
          %v369 = vld [vmem:[%s286 + $0x10] sm:$0xff]
          %v370 = vld [vmem:[%s286 + $0x18] sm:$0xff]
          %v371 = vld [vmem:[%s348] sm:$0x1]
          %v373 = vlaneseq
          %v374 = vshrl.u32 %v373, 7
          %v375 = vsub.s32 0, %v374
          %v376 = vrot.slane %v371, %v375
          %vm378 = vcmask 261120
          %v380 = vsel %vm378, %v366, 0
          %382 = vmatprep.subr.mxu0 0.0
          %383 = vmatpush1.msra.mxu0 %v367
          %384 = vmatprep.subr.mxu0 0.0
          %385 = vmatpush1.msra.mxu0 %v368
          %386 = vmatprep.subr.mxu0 0.0
          %387 = vmatpush1.msra.mxu0 %v369
          %388 = vmatprep.subr.mxu0 0.0
          %389 = vmatpush1.msra.mxu0 %v370
          %390 = vmatprep.subr.mxu0 0.0
          %391 = vmatpush1.msra.mxu0 0.0
          %392 = vmatprep.subr.mxu0 0.0
          %393 = vmatpush1.msra.mxu0 0.0
          %394 = vmatprep.subr.mxu0 0.0
          %395 = vmatpush1.msra.mxu0 0.0
          %396 = vmatprep.subr.mxu0 0.0
          %397 = vmatpush1.msra.mxu0 0.0
          %398 = vmatprep.subr.mxu0 0.0
          %399 = vmatpush1.msra.mxu0 0.0
          %400 = vmatprep.subr.mxu0 0.0
          %401 = vmatpush1.msra.mxu0 0.0
          %402 = vmatprep.subr.mxu0 0.0
          %403 = vmatpush1.msra.mxu0 0.0
          %404 = vmatprep.subr.mxu0 0.0
          %405 = vmatpush1.msra.mxu0 0.0
          %406 = vmatprep.subr.mxu0 0.0
          %407 = vmatpush1.msra.mxu0 0.0
          %408 = vmatprep.subr.mxu0 0.0
          %409 = vmatpush1.msra.mxu0 0.0
          %410 = vmatprep.subr.mxu0 0.0
          %411 = vmatpush1.msra.mxu0 0.0
          %412 = vmatprep.subr.mxu0 0.0
          %413 = vmatpush1.msra.mxu0 0.0
          %414 = vmatprep.subr.mxu0 0.0
          %415 = vmatpush1.msra.mxu0 0.0
          %416 = vmatprep.subr.mxu0 0.0
          %417 = vmatpush1.msra.mxu0 0.0
          %418 = vmatprep.subr.mxu0 0.0
          %419 = vmatpush1.msra.mxu0 0.0
          %420 = vmatprep.subr.mxu0 0.0
          %421 = vmatpush1.msra.mxu0 0.0
          %422 = vmatprep.subr.mxu0 0.0
          %423 = vmatpush1.msra.mxu0 0.0
          %424 = vmatprep.subr.mxu0 0.0
          %425 = vmatpush1.msra.mxu0 0.0
          %426 = vmatprep.subr.mxu0 0.0
          %427 = vmatpush1.msra.mxu0 0.0
          %428 = vmatprep.subr.mxu0 0.0
          %429 = vmatpush1.msra.mxu0 0.0
          %430 = vmatprep.subr.mxu0 0.0
          %431 = vmatpush1.msra.mxu0 0.0
          %432 = vmatprep.subr.mxu0 0.0
          %433 = vmatpush1.msra.mxu0 0.0
          %434 = vmatprep.subr.mxu0 0.0
          %435 = vmatpush1.msra.mxu0 0.0
          %436 = vmatprep.subr.mxu0 0.0
          %437 = vmatpush1.msra.mxu0 0.0
          %438 = vmatprep.subr.mxu0 0.0
          %439 = vmatpush1.msra.mxu0 0.0
          %440 = vmatprep.subr.mxu0 0.0
          %441 = vmatpush1.msra.mxu0 0.0
          %442 = vmatprep.subr.mxu0 0.0
          %443 = vmatpush1.msra.mxu0 0.0
          %444 = vmatprep.subr.mxu0 0.0
          %445 = vmatpush1.msra.mxu0 0.0
          %446 = vmatprep.mubr.f32.mxu0 0.0
          %447 = vmatmul.mubr.f32.gmra.mrb[0].mxu0 %v380
          %v448 = vpop.f32.mrb[0].mxu0
          %v449 = vadd.f32 %v376, %v448
          %v450 = vpop.f32.mrb[0].mxu0
          %451 = vdwg.mxu0
          %v452 = vmax.f32 %v449, 0.0
          %vm453 = vcmask 254976
          %454 = vst.msk [vmem:[#allocation2] sm:$0x3] %vm453, %v452
        $region52: #{self_supervised_head.3} parent=39 // pred_fallthru
          _
        %v455 = vld [vmem:[#allocation2] sm:$0x3]
        %v456 = vld [vmem:[%s295] sm:$0xff]
        %v457 = vld [vmem:[%s295 + $0x8] sm:$0xff]
        %v458 = vld [vmem:[%s295 + $0x10] sm:$0xff]
        %v459 = vld [vmem:[%s295 + $0x18] sm:$0xff]
        %v460 = vld [vmem:[%s354] sm:$0x1]
        %v462 = vlaneseq
        %v463 = vshrl.u32 %v462, 7
        %v464 = vsub.s32 0, %v463
        %v465 = vrot.slane %v460, %v464
        %vm467 = vcmask 261120
        %v469 = vsel %vm467, %v455, 0
        %471 = vmatprep.subr.mxu0 0.0
        %472 = vmatpush1.msra.mxu0 %v456
        %473 = vmatprep.subr.mxu0 0.0
        %474 = vmatpush1.msra.mxu0 %v457
        %475 = vmatprep.subr.mxu0 0.0
        %476 = vmatpush1.msra.mxu0 %v458
        %477 = vmatprep.subr.mxu0 0.0
        %478 = vmatpush1.msra.mxu0 %v459
        %479 = vmatprep.subr.mxu0 0.0
        %480 = vmatpush1.msra.mxu0 0.0
        %481 = vmatprep.subr.mxu0 0.0
        %482 = vmatpush1.msra.mxu0 0.0
        %483 = vmatprep.subr.mxu0 0.0
        %484 = vmatpush1.msra.mxu0 0.0
        %485 = vmatprep.subr.mxu0 0.0
        %486 = vmatpush1.msra.mxu0 0.0
        %487 = vmatprep.subr.mxu0 0.0
        %488 = vmatpush1.msra.mxu0 0.0
        %489 = vmatprep.subr.mxu0 0.0
        %490 = vmatpush1.msra.mxu0 0.0
        %491 = vmatprep.subr.mxu0 0.0
        %492 = vmatpush1.msra.mxu0 0.0
        %493 = vmatprep.subr.mxu0 0.0
        %494 = vmatpush1.msra.mxu0 0.0
        %495 = vmatprep.subr.mxu0 0.0
        %496 = vmatpush1.msra.mxu0 0.0
        %497 = vmatprep.subr.mxu0 0.0
        %498 = vmatpush1.msra.mxu0 0.0
        %499 = vmatprep.subr.mxu0 0.0
        %500 = vmatpush1.msra.mxu0 0.0
        %501 = vmatprep.subr.mxu0 0.0
        %502 = vmatpush1.msra.mxu0 0.0
        %503 = vmatprep.subr.mxu0 0.0
        %504 = vmatpush1.msra.mxu0 0.0
        %505 = vmatprep.subr.mxu0 0.0
        %506 = vmatpush1.msra.mxu0 0.0
        %507 = vmatprep.subr.mxu0 0.0
        %508 = vmatpush1.msra.mxu0 0.0
        %509 = vmatprep.subr.mxu0 0.0
        %510 = vmatpush1.msra.mxu0 0.0
        %511 = vmatprep.subr.mxu0 0.0
        %512 = vmatpush1.msra.mxu0 0.0
        %513 = vmatprep.subr.mxu0 0.0
        %514 = vmatpush1.msra.mxu0 0.0
        %515 = vmatprep.subr.mxu0 0.0
        %516 = vmatpush1.msra.mxu0 0.0
        %517 = vmatprep.subr.mxu0 0.0
        %518 = vmatpush1.msra.mxu0 0.0
        %519 = vmatprep.subr.mxu0 0.0
        %520 = vmatpush1.msra.mxu0 0.0
        %521 = vmatprep.subr.mxu0 0.0
        %522 = vmatpush1.msra.mxu0 0.0
        %523 = vmatprep.subr.mxu0 0.0
        %524 = vmatpush1.msra.mxu0 0.0
        %525 = vmatprep.subr.mxu0 0.0
        %526 = vmatpush1.msra.mxu0 0.0
        %527 = vmatprep.subr.mxu0 0.0
        %528 = vmatpush1.msra.mxu0 0.0
        %529 = vmatprep.subr.mxu0 0.0
        %530 = vmatpush1.msra.mxu0 0.0
        %531 = vmatprep.subr.mxu0 0.0
        %532 = vmatpush1.msra.mxu0 0.0
        %533 = vmatprep.subr.mxu0 0.0
        %534 = vmatpush1.msra.mxu0 0.0
        %535 = vmatprep.mubr.f32.mxu0 0.0
        %536 = vmatmul.mubr.f32.gmra.mrb[0].mxu0 %v469
        %v537 = vpop.f32.mrb[0].mxu0
        %v538 = vadd.f32 %v465, %v537
        %v539 = vpop.f32.mrb[0].mxu0
        %540 = vdwg.mxu0
        %541 = vst [vmem:[%s361] sm:$0x3] %v538
        %p542 = scmp.lt.s32.totalorder %s26, 1
        %s543 = scalar_select %p542, %s26, 1
        %p544 = scmp.lt.s32.totalorder %s27, 0
        %s545 = scalar_select %p544, %s27, 0
        %s546 = sadd.s32 %s545, %s543
        %s547 = smul.addr %s546, 2
        %s548 = scalar_lea.vmem %s5, %s547
        // Predicated region
        $region53: #{self_supervised_head.3} parent=39 // pred_check
          %p549 = pneg %p188
        $region54: #{self_supervised_head.3} parent=39 // pred_check_branch
          %551 = sbr.rel (%p549) target = $region56
        $region55: #{self_supervised_head.3} parent=39 // pred_region
          _
        $region56: #{self_supervised_head.3} parent=39 // pred_fallthru
          _
      $region40: #{self_supervised_head.3} parent=5 // pred_fallthru
        _
      %p552 = scmp.le.s32.totalorder 2, %s17
      // Predicated region
      $region57: #{self_supervised_head.3} parent=5 // pred_check
        %p553 = pneg %p552
      $region58: #{self_supervised_head.3} parent=5 // pred_check_branch
        %555 = sbr.rel (%p553) target = $region60
      $region59: #{self_supervised_head.3} parent=5 // pred_region
        %s556 = ssub.s32 %s17, 2
        // Predicated region
        $region61: #{self_supervised_head.3} parent=59 // pred_check
          %p557 = pneg %p194
        $region62: #{self_supervised_head.3} parent=59 // pred_check_branch
          %559 = sbr.rel (%p557) target = $region64
        $region63: #{self_supervised_head.3} parent=59 // pred_region
          %p560 = scmp.lt.s32.totalorder %s28, 1
          %s561 = scalar_select %p560, %s28, 1
          %p562 = scmp.lt.s32.totalorder %s29, 0
          %s563 = scalar_select %p562, %s29, 0
          %s564 = sadd.s32 %s563, %s561
          %s565 = smul.addr %s564, 2
          %s566 = scalar_lea.vmem %s5, %s565
        $region64: #{self_supervised_head.3} parent=59 // pred_fallthru
          _
      $region60: #{self_supervised_head.3} parent=5 // pred_fallthru
        _
    $region6: #{self_supervised_head.3} parent=1 // loop_footer
      %s21 = sadd.s32 1, %s17
    $region7: #{self_supervised_head.3} parent=1 // loop_footer_branch
      %16 = sbr.rel target = $region3
    $region8: #{self_supervised_head.3} parent=1 // loop_exit
      _
    %567 = vsyncpa [#allocation4], 1
    %s568 = scalar_lea.sflag [#allocation4], 1
    %569 = vsyncpa %s568, 1
    %570 = vsyncpa [#allocation6], 1
    %s571 = scalar_lea.sflag [#allocation6], 1
    %572 = vsyncpa %s571, 1

</llo_original>
